<compile_context>
chip_gen: v7x
topology: tpu7x:2x2x1
jax: 0.10.0
libtpu: 0.0.40
codegen_flags: <defaults>
</compile_context>

<pallas_src>
import functools

import numpy as np
import jax
import jax.numpy as jnp
from jax.experimental import pallas as pl
from jax.experimental.pallas import tpu as pltpu


_SENTINEL = 1.0e8  # padded points sit far away: d2 ~ 1e16 >> r^2, no f32 overflow


def _round_up(x: int, m: int) -> int:
    return ((x + m - 1) // m) * m


def _largest_divisor_tile(kp: int, candidates) -> int:
    for t in candidates:
        if t <= kp and kp % t == 0:
            return t
    return 128  # kp is always a multiple of 128


def _vmem_capacity_bytes() -> int:
    """Physical VMEM per TensorCore; conservative fallback if query fails."""
    try:
        info = pltpu.get_tpu_info()
        cap = getattr(info, "vmem_capacity_bytes", None)
        if cap:
            return int(cap)
    except Exception:
        pass
    return 64 * 1024 * 1024  # v7x per-TC VMEM (smallest across generations)


def _per_step_vmem_bytes(bt: int, ti: int, tj: int) -> int:
    plane = 4 * bt * ti * tj * 4      # ~3-4 live (bt,ti,tj) f32 temporaries
    cols = 2 * bt * ti * 128 * 4      # (bt,ti,3) lane-pads 3->128, double-buffered
    rows = 2 * bt * 8 * tj * 4        # (bt,3,tj) sublane-pads 3->8, double-buffered
    outb = 2 * bt * 8 * tj * 4        # (bt,1,tj) i32 output, double-buffered
    scr = bt * 8 * tj * 4             # counts scratch
    return plane + cols + rows + outb + scr


def _ror_count_kernel(r_sq: float, n_points: int, use_mxu: bool):
    """Kernel body for one (batch-block, j-tile, i-tile) grid step."""

    def kernel(cols_ref, rows_ref, mask_ref, counts_ref):
        # cols_ref:   (bt, ti, 3)  — i points, point index on sublanes
        # rows_ref:   (bt, 3, tj)  — j points, point index on lanes
        # mask_ref:   (bt, 1, tj)  — int32 keep mask (lane-dense, written last)
        # counts_ref: (bt, 1, tj)  — f32 neighbor-count accumulator (scratch)
        i_step = pl.program_id(2)

        @pl.when(i_step == 0)
        def _():
            counts_ref[...] = jnp.zeros_like(counts_ref)

        pc = cols_ref[...]                       # (bt, ti, 3) f32
        pr = rows_ref[...]                       # (bt, 3, tj) f32

        # Pairwise squared distances via per-coordinate broadcasted diffs
        # (pure VPU; exact 0 on the diagonal, no gram-identity cancellation).
        d2 = None
        for c in range(3):
            col = pc[:, :, c:c + 1]              # (bt, ti, 1)
            row = pr[:, c:c + 1, :]              # (bt, 1, tj)
            diff = col - row                     # (bt, ti, tj)
            sq = diff * diff
            d2 = sq if d2 is None else d2 + sq

        within = (d2 <= jnp.float32(r_sq)).astype(jnp.float32)   # 0/1

        if use_mxu:
            # Offload the sublane (i) reduction to the otherwise-idle MXU:
            # ones(8,ti) @ within(ti,tj) per batch; row 0 holds the counts.
            bt, ti, _ = pc.shape
            ones = jnp.ones((bt, 8, ti), jnp.float32)
            part = jnp.einsum("bsi,bij->bsj", ones, within,
                              preferred_element_type=jnp.float32)
            counts_ref[...] += part[:, 0:1, :]
        else:
            counts_ref[...] += jnp.sum(within, axis=1, keepdims=True)

        @pl.when(i_step == pl.num_programs(2) - 1)
        def _():
            mask_ref[...] = (
                counts_ref[...] >= jnp.float32(n_points)
            ).astype(jnp.int32)

    return kernel


@functools.partial(jax.jit, static_argnames=("n", "r"))
def ror_keep_mask(x: jax.Array, n: int = 2, r: float = 1.1) -> jax.Array:
    """Returns an int32 keep mask of shape [B, K] (1 = keep, 0 = outlier)."""
    B, K, C = x.shape
    assert C == 3, "point clouds must be [B, K, 3]"
    x32 = x.astype(jnp.float32)

    # Lane-dense padding of the point axis; padded rows get a far-away sentinel
    # so they never count as neighbors of real points (padded columns and the
    # padded rows themselves are sliced off below).
    Kp = _round_up(max(K, 1), 128)
    if Kp > K:
        x_pad = jnp.pad(x32, ((0, 0), (0, Kp - K), (0, 0)),
                        constant_values=_SENTINEL)
    else:
        x_pad = x32
    x_rows = jnp.transpose(x_pad, (0, 2, 1))        # (B, 3, Kp)

    # Tile sizes: j (lanes) up to 512, i (sublanes) up to 256, both divisors of Kp.
    tj = _largest_divisor_tile(Kp, (512, 256, 128))
    ti = _largest_divisor_tile(Kp, (256, 128))

    # bt: largest divisor of B (<= 32) whose per-step footprint stays within a
    # generation-safe budget.  Divisor => no fake padded clouds, no forced
    # B//2 split; megacore parallelism comes from the (batch, j) grid axes.
    plane_budget = 4 * 1024 * 1024
    step_budget = 24 * 1024 * 1024
    bt = 1
    for d in range(1, min(B, 32) + 1):
        if B % d != 0:
            continue
        if (d * ti * tj * 4 <= plane_budget
                and _per_step_vmem_bytes(d, ti, tj) <= step_budget):
            bt = d

    est = _per_step_vmem_bytes(bt, ti, tj)
    cp_kwargs = dict(dimension_semantics=("parallel", "parallel", "arbitrary"))
    if est > 8 * 1024 * 1024:
        cap = int(0.75 * _vmem_capacity_bytes())        # <= 48 MiB on v7x
        cp_kwargs["vmem_limit_bytes"] = int(
            min(max(2 * est, 32 * 1024 * 1024), cap))

    use_mxu = ti >= 256   # offload the count reduction when tiles are large

    grid = (B // bt, Kp // tj, Kp // ti)
    out = pl.pallas_call(
        _ror_count_kernel(float(r) * float(r), int(n), use_mxu),
        out_shape=jax.ShapeDtypeStruct((B, 1, Kp), jnp.int32),
        grid_spec=pltpu.PrefetchScalarGridSpec(
            num_scalar_prefetch=0,
            grid=grid,
            in_specs=[
                pl.BlockSpec((bt, ti, 3), lambda b, j, i: (b, i, 0)),
                pl.BlockSpec((bt, 3, tj), lambda b, j, i: (b, 0, j)),
            ],
            out_specs=pl.BlockSpec((bt, 1, tj), lambda b, j, i: (b, 0, j)),
            scratch_shapes=[pltpu.VMEM((bt, 1, tj), jnp.float32)],
        ),
        compiler_params=pltpu.CompilerParams(**cp_kwargs),
    )(x_pad, x_rows)

    return out[:, 0, :K]


class RORDefenseJax:
    """Radius outlier removal defense (matches RORDefense.forward semantics)."""

    def __init__(self, n: int = 2, r: float = 1.1):
        self.n = n
        self.r = r

    def keep_mask(self, x: jax.Array) -> jax.Array:
        """Device-resident [B, K] int32 keep mask (preferred downstream API)."""
        return ror_keep_mask(x, n=self.n, r=float(self.r))

    def __call__(self, x: jax.Array):
        # The module's output is a ragged Python list of per-cloud arrays, so a
        # single host transfer of (x, mask) is unavoidable here.
        mask = jax.block_until_ready(self.keep_mask(x))
        x_np = np.asarray(x)
        mask_np = np.asarray(mask)
        return [x_np[b][mask_np[b] == 1] for b in range(x_np.shape[0])]


def _reference_keep_mask(x_np: np.ndarray, n: int, r: float,
                         dtype=np.float64) -> np.ndarray:
    """Numpy reference of the open3d remove_radius_outlier keep mask."""
    B, K, _ = x_np.shape
    r_sq = dtype(float(r) * float(r))
    out = np.zeros((B, K), dtype=np.int32)
    for b in range(B):
        p = x_np[b].astype(dtype)
        d = p[:, None, :] - p[None, :, :]
        sq = d * d
        d2 = (sq[..., 0] + sq[..., 1]) + sq[..., 2]   # same order as kernel
        counts = np.sum(d2 <= r_sq, axis=0)           # includes self
        out[b] = (counts >= n).astype(np.int32)
    return out


if __name__ == "__main__":
    key = jax.random.PRNGKey(0)
    defense = RORDefenseJax(n=2, r=1.1)

    # (B, K) cases: tiny shipped case, padded case (Kp > K), and a multi-i-step
    # case (K=512 -> ti=256, exercises the accumulator + MXU reduce path).
    for (B, K) in [(2, 64), (2, 200), (2, 512)]:
        k0, k1, k2 = jax.random.split(jax.random.fold_in(key, K), 3)
        base = jax.random.uniform(k0, (B, K, 3), dtype=jnp.float32)
        is_outlier = (jax.random.uniform(k1, (B, K, 1)) > 0.9).astype(jnp.float32)
        x = base + is_outlier * 10.0 * jax.random.normal(k2, (B, K, 3),
                                                         dtype=jnp.float32)

        mask = np.asarray(jax.block_until_ready(ror_keep_mask(x, n=2, r=1.1)))
        x_np = np.asarray(x)

        # Exact check vs a float32 reference that mirrors the kernel math.
        ref32 = _reference_keep_mask(x_np, 2, 1.1, dtype=np.float32)
        assert np.array_equal(mask, ref32), f"f32 mask mismatch at K={K}"

        # Semantic check vs the float64 (open3d-precision) reference; allow a
        # vanishing fraction of flips for points exactly on the radius boundary.
        ref64 = _reference_keep_mask(x_np, 2, 1.1, dtype=np.float64)
        assert np.mean(mask != ref64) < 1e-3, f"f64 mask mismatch at K={K}"

        kept = defense(x)   # list of [N_b, 3] numpy arrays
        assert len(kept) == B
        for b in range(B):
            assert kept[b].shape == (int(ref32[b].sum()), 3)

    print("KERNEL_OK")
</pallas_src>

<mosaic_0001>
module attributes {stable_mosaic.version = 11 : i64} {
  func.func @kernel(%arg0: i32, %arg1: i32, %arg2: i32, %arg3: memref<2x128x3xf32, #tpu.memory_space<vmem>>, %arg4: memref<2x3x128xf32, #tpu.memory_space<vmem>>, %arg5: memref<2x1x128xi32, #tpu.memory_space<vmem>>, %arg6: memref<2x1x128xf32, #tpu.memory_space<vmem>>) attributes {dimension_semantics = [#tpu.dimension_semantics<parallel>, #tpu.dimension_semantics<parallel>, #tpu.dimension_semantics<arbitrary>], iteration_bounds = array<i64: 1, 1, 1>, scalar_prefetch = 0 : i64, scratch_operands = 1 : i64, tpu.core_type = #tpu.core_type<tc>, window_params = [{transform_indices = @transform_0, window_bounds = array<i64: 2, 128, 3>}, {transform_indices = @transform_1, window_bounds = array<i64: 2, 3, 128>}, {transform_indices = @transform_2, window_bounds = array<i64: 2, 1, 128>}]} {
    %c0_i32 = arith.constant 0 : i32
    %0 = arith.cmpi eq, %arg2, %c0_i32 : i32
    %1 = arith.extui %0 : i1 to i32
    %c0_i32_0 = arith.constant 0 : i32
    %2 = arith.cmpi ne, %1, %c0_i32_0 : i32
    scf.if %2 {
      %cst_15 = arith.constant 0.000000e+00 : f32
      %37 = vector.broadcast %cst_15 : f32 to vector<2x1x128xf32>
      %c0_16 = arith.constant 0 : index
      %c0_17 = arith.constant 0 : index
      %c0_18 = arith.constant 0 : index
      %38 = vector.load %arg6[%c0_16, %c0_17, %c0_18] : memref<2x1x128xf32, #tpu.memory_space<vmem>>, vector<2x1x128xf32>
      tpu.vector_store %arg6[%c0_16, %c0_17, %c0_18], %37 {strides = array<i32>} : memref<2x1x128xf32, #tpu.memory_space<vmem>>, vector<2x1x128xf32>,
    } else {
    }
    %c0 = arith.constant 0 : index
    %c0_1 = arith.constant 0 : index
    %c0_2 = arith.constant 0 : index
    %3 = vector.load %arg3[%c0, %c0_1, %c0_2] : memref<2x128x3xf32, #tpu.memory_space<vmem>>, vector<2x128x3xf32>
    %c0_3 = arith.constant 0 : index
    %c0_4 = arith.constant 0 : index
    %c0_5 = arith.constant 0 : index
    %4 = vector.load %arg4[%c0_3, %c0_4, %c0_5] : memref<2x3x128xf32, #tpu.memory_space<vmem>>, vector<2x3x128xf32>
    %5 = vector.extract_strided_slice %3 {offsets = [0, 0, 0], sizes = [2, 128, 1], strides = [1, 1, 1]} : vector<2x128x3xf32> to vector<2x128x1xf32>
    %6 = vector.extract_strided_slice %4 {offsets = [0, 0, 0], sizes = [2, 1, 128], strides = [1, 1, 1]} : vector<2x3x128xf32> to vector<2x1x128xf32>
    %7 = vector.broadcast %5 : vector<2x128x1xf32> to vector<2x128x128xf32>
    %8 = vector.broadcast %6 : vector<2x1x128xf32> to vector<2x128x128xf32>
    %9 = arith.subf %7, %8 : vector<2x128x128xf32>
    %10 = arith.mulf %9, %9 : vector<2x128x128xf32>
    %11 = vector.extract_strided_slice %3 {offsets = [0, 0, 1], sizes = [2, 128, 1], strides = [1, 1, 1]} : vector<2x128x3xf32> to vector<2x128x1xf32>
    %12 = vector.extract_strided_slice %4 {offsets = [0, 1, 0], sizes = [2, 1, 128], strides = [1, 1, 1]} : vector<2x3x128xf32> to vector<2x1x128xf32>
    %13 = vector.broadcast %11 : vector<2x128x1xf32> to vector<2x128x128xf32>
    %14 = vector.broadcast %12 : vector<2x1x128xf32> to vector<2x128x128xf32>
    %15 = arith.subf %13, %14 : vector<2x128x128xf32>
    %16 = arith.mulf %15, %15 : vector<2x128x128xf32>
    %17 = arith.addf %10, %16 : vector<2x128x128xf32>
    %18 = vector.extract_strided_slice %3 {offsets = [0, 0, 2], sizes = [2, 128, 1], strides = [1, 1, 1]} : vector<2x128x3xf32> to vector<2x128x1xf32>
    %19 = vector.extract_strided_slice %4 {offsets = [0, 2, 0], sizes = [2, 1, 128], strides = [1, 1, 1]} : vector<2x3x128xf32> to vector<2x1x128xf32>
    %20 = vector.broadcast %18 : vector<2x128x1xf32> to vector<2x128x128xf32>
    %21 = vector.broadcast %19 : vector<2x1x128xf32> to vector<2x128x128xf32>
    %22 = arith.subf %20, %21 : vector<2x128x128xf32>
    %23 = arith.mulf %22, %22 : vector<2x128x128xf32>
    %24 = arith.addf %17, %23 : vector<2x128x128xf32>
    %cst = arith.constant 1.210000e+00 : f32
    %25 = vector.broadcast %cst : f32 to vector<2x128x128xf32>
    %26 = arith.cmpf ole, %24, %25 : vector<2x128x128xf32>
    %27 = arith.extui %26 : vector<2x128x128xi1> to vector<2x128x128xi32>
    %28 = arith.sitofp %27 : vector<2x128x128xi32> to vector<2x128x128xf32>
    %c0_6 = arith.constant 0 : index
    %c0_7 = arith.constant 0 : index
    %c0_8 = arith.constant 0 : index
    %29 = vector.load %arg6[%c0_6, %c0_7, %c0_8] : memref<2x1x128xf32, #tpu.memory_space<vmem>>, vector<2x1x128xf32>
    %cst_9 = arith.constant dense<0.000000e+00> : vector<2x128xf32>
    %30 = vector.multi_reduction <add>, %28, %cst_9 [1] : vector<2x128x128xf32> to vector<2x128xf32>
    %31 = vector.shape_cast %30 : vector<2x128xf32> to vector<2x1x128xf32>
    %32 = arith.addf %29, %31 : vector<2x1x128xf32>
    %c0_10 = arith.constant 0 : index
    %c0_11 = arith.constant 0 : index
    %c0_12 = arith.constant 0 : index
    %33 = vector.load %arg6[%c0_10, %c0_11, %c0_12] : memref<2x1x128xf32, #tpu.memory_space<vmem>>, vector<2x1x128xf32>
    tpu.vector_store %arg6[%c0_10, %c0_11, %c0_12], %32 {strides = array<i32>} : memref<2x1x128xf32, #tpu.memory_space<vmem>>, vector<2x1x128xf32>,
    %c0_i32_13 = arith.constant 0 : i32
    %34 = arith.cmpi eq, %arg2, %c0_i32_13 : i32
    %35 = arith.extui %34 : i1 to i32
    %c0_i32_14 = arith.constant 0 : i32
    %36 = arith.cmpi ne, %35, %c0_i32_14 : i32
    scf.if %36 {
      %c0_15 = arith.constant 0 : index
      %c0_16 = arith.constant 0 : index
      %c0_17 = arith.constant 0 : index
      %37 = vector.load %arg6[%c0_15, %c0_16, %c0_17] : memref<2x1x128xf32, #tpu.memory_space<vmem>>, vector<2x1x128xf32>
      %cst_18 = arith.constant 2.000000e+00 : f32
      %38 = vector.broadcast %cst_18 : f32 to vector<2x1x128xf32>
      %39 = arith.cmpf oge, %37, %38 : vector<2x1x128xf32>
      %40 = arith.extui %39 : vector<2x1x128xi1> to vector<2x1x128xi32>
      %c0_19 = arith.constant 0 : index
      %c0_20 = arith.constant 0 : index
      %c0_21 = arith.constant 0 : index
      %41 = vector.load %arg5[%c0_19, %c0_20, %c0_21] : memref<2x1x128xi32, #tpu.memory_space<vmem>>, vector<2x1x128xi32>
      tpu.vector_store %arg5[%c0_19, %c0_20, %c0_21], %40 {strides = array<i32>} : memref<2x1x128xi32, #tpu.memory_space<vmem>>, vector<2x1x128xi32>,
    } else {
    }
    return
  }
  func.func @transform_0(%arg0: i32, %arg1: i32, %arg2: i32) -> (i32, i32, i32) {
    %c0_i32 = arith.constant 0 : i32
    %c0_i32_0 = arith.constant 0 : i32
    return %arg0, %arg2, %c0_i32 : i32, i32, i32
  }
  func.func @transform_1(%arg0: i32, %arg1: i32, %arg2: i32) -> (i32, i32, i32) {
    %c0_i32 = arith.constant 0 : i32
    %c0_i32_0 = arith.constant 0 : i32
    return %arg0, %c0_i32, %arg1 : i32, i32, i32
  }
  func.func @transform_2(%arg0: i32, %arg1: i32, %arg2: i32) -> (i32, i32, i32) {
    %c0_i32 = arith.constant 0 : i32
    %c0_i32_0 = arith.constant 0 : i32
    return %arg0, %c0_i32, %arg1 : i32, i32, i32
  }
}

</mosaic_0001>

<llo_original>
// kernel: ror_keep_mask.1
$region0: #{ror_keep_mask.1}
  #allocation0 [shape = 'u32[]', space=smem, size = 0x4, offset = 0x4, fixed_abs, tag = 'smem constant byte address 0x4 - core index']
  #allocation1 [shape = 'u32[144,128]{1,0:T(1,128)}', space=vmem, size = 0x12000, scoped, tag = 'internal scratch']
  #allocation2 [shape = 'f32[2,1,128]{2,1,0:T(1,128)}', space=vmem, size = 0x400, scoped, tag = 'scratch operand']
  %s0 = inlined_call_operand.vmem [shape: f32[2,128,3], index: 0, kind: input, shape index: {}]
  %s1 = inlined_call_operand.vmem [shape: f32[2,3,128], index: 1, kind: input, shape index: {}]
  %s2 = inlined_call_operand.hbm [shape: s32[2,1,128], index: 2, kind: output, shape index: {}]
  %s3 = sld [smem:[#allocation0]]
  $region26: #{ror_keep_mask.1} parent=0
    _
  %s5 = ssub.s32 1, %s3
  %s6 = scalar_select 0, %s5, %s3
  $region1: #{ror_keep_mask.1} parent=0
    #allocation3 [shape = 'u8[1024]{0}', space=vmem, size = 0x400, scoped, tag = 'output window, operand 0, single buffered']
    #allocation4 [shape = 's32[1]{0}', space=sflag, size = 0x4, scoped, tag = 'scoped memory for ror_keep_mask.1']
    %7 = vsyncpa [#allocation4], 0
    // Predicated region
    $region2: #{ror_keep_mask.1} parent=1 // pred_check
      _
    $region3: #{ror_keep_mask.1} parent=1 // pred_check_branch
      %9 = sbr.rel (0) target = $region5
    $region4: #{ror_keep_mask.1} parent=1 // pred_region
      _
    $region5: #{ror_keep_mask.1} parent=1 // pred_fallthru
      _
    // Predicated region
    $region6: #{ror_keep_mask.1} parent=1 // pred_check
      _
    $region7: #{ror_keep_mask.1} parent=1 // pred_check_branch
      %11 = sbr.rel (0) target = $region9
    $region8: #{ror_keep_mask.1} parent=1 // pred_region
      _
    $region9: #{ror_keep_mask.1} parent=1 // pred_fallthru
      _
    %p12 = scmp.eq.s32.totalorder 0, 0
    // Predicated region
    $region10: #{ror_keep_mask.1} parent=1 // pred_check
      %p13 = pneg %p12
    $region11: #{ror_keep_mask.1} parent=1 // pred_check_branch
      %15 = sbr.rel (%p13) target = $region13
    $region12: #{ror_keep_mask.1} parent=1 // pred_region
      %16 = vst [vmem:[#allocation2] sm:$0x1] 0.0
      %17 = vst [vmem:[#allocation2 + $0x1] sm:$0x1] 0.0
    $region13: #{ror_keep_mask.1} parent=1 // pred_fallthru
      _
    %v18 = vld [vmem:[%s0] sm:$0xff]
    %v19 = vld [vmem:[%s0 + $0x8] sm:$0xff]
    %v20 = vld [vmem:[%s0 + $0x10] sm:$0xff]
    %v21 = vld [vmem:[%s0 + $0x18] sm:$0xff]
    %v22 = vld [vmem:[%s0 + $0x20] sm:$0xff]
    %v23 = vld [vmem:[%s0 + $0x28] sm:$0xff]
    %v24 = vld [vmem:[%s0 + $0x30] sm:$0xff]
    %v25 = vld [vmem:[%s0 + $0x38] sm:$0xff]
    %v26 = vld [vmem:[%s0 + $0x40] sm:$0xff]
    %v27 = vld [vmem:[%s0 + $0x48] sm:$0xff]
    %v28 = vld [vmem:[%s0 + $0x50] sm:$0xff]
    %v29 = vld [vmem:[%s0 + $0x58] sm:$0xff]
    %v30 = vld [vmem:[%s0 + $0x60] sm:$0xff]
    %v31 = vld [vmem:[%s0 + $0x68] sm:$0xff]
    %v32 = vld [vmem:[%s0 + $0x70] sm:$0xff]
    %v33 = vld [vmem:[%s0 + $0x78] sm:$0xff]
    %v34 = vld [vmem:[%s0 + $0x80] sm:$0xff]
    %v35 = vld [vmem:[%s0 + $0x88] sm:$0xff]
    %v36 = vld [vmem:[%s0 + $0x90] sm:$0xff]
    %v37 = vld [vmem:[%s0 + $0x98] sm:$0xff]
    %v38 = vld [vmem:[%s0 + $0xa0] sm:$0xff]
    %v39 = vld [vmem:[%s0 + $0xa8] sm:$0xff]
    %v40 = vld [vmem:[%s0 + $0xb0] sm:$0xff]
    %v41 = vld [vmem:[%s0 + $0xb8] sm:$0xff]
    %v42 = vld [vmem:[%s0 + $0xc0] sm:$0xff]
    %v43 = vld [vmem:[%s0 + $0xc8] sm:$0xff]
    %v44 = vld [vmem:[%s0 + $0xd0] sm:$0xff]
    %v45 = vld [vmem:[%s0 + $0xd8] sm:$0xff]
    %v46 = vld [vmem:[%s0 + $0xe0] sm:$0xff]
    %v47 = vld [vmem:[%s0 + $0xe8] sm:$0xff]
    %v48 = vld [vmem:[%s0 + $0xf0] sm:$0xff]
    %v49 = vld [vmem:[%s0 + $0xf8] sm:$0xff]
    %v50 = vld [vmem:[%s1] sm:$0x7]
    %v51 = vld [vmem:[%s1 + $0x4] sm:$0x7]
    %53 = vset.pattern.permute.xlu0 0
    %54 = vperm.xlu0 %53, %v18
    %v55 = vpop.permute.xlu0 %54
    %58 = vset.pattern.permute.xlu0 0
    %59 = vperm.xlu0 %58, %v19
    %v60 = vpop.permute.xlu0 %59
    %63 = vset.pattern.permute.xlu0 0
    %64 = vperm.xlu0 %63, %v20
    %v65 = vpop.permute.xlu0 %64
    %68 = vset.pattern.permute.xlu0 0
    %69 = vperm.xlu0 %68, %v21
    %v70 = vpop.permute.xlu0 %69
    %73 = vset.pattern.permute.xlu0 0
    %74 = vperm.xlu0 %73, %v22
    %v75 = vpop.permute.xlu0 %74
    %78 = vset.pattern.permute.xlu0 0
    %79 = vperm.xlu0 %78, %v23
    %v80 = vpop.permute.xlu0 %79
    %83 = vset.pattern.permute.xlu0 0
    %84 = vperm.xlu0 %83, %v24
    %v85 = vpop.permute.xlu0 %84
    %88 = vset.pattern.permute.xlu0 0
    %89 = vperm.xlu0 %88, %v25
    %v90 = vpop.permute.xlu0 %89
    %93 = vset.pattern.permute.xlu0 0
    %94 = vperm.xlu0 %93, %v26
    %v95 = vpop.permute.xlu0 %94
    %98 = vset.pattern.permute.xlu0 0
    %99 = vperm.xlu0 %98, %v27
    %v100 = vpop.permute.xlu0 %99
    %103 = vset.pattern.permute.xlu0 0
    %104 = vperm.xlu0 %103, %v28
    %v105 = vpop.permute.xlu0 %104
    %108 = vset.pattern.permute.xlu0 0
    %109 = vperm.xlu0 %108, %v29
    %v110 = vpop.permute.xlu0 %109
    %113 = vset.pattern.permute.xlu0 0
    %114 = vperm.xlu0 %113, %v30
    %v115 = vpop.permute.xlu0 %114
    %118 = vset.pattern.permute.xlu0 0
    %119 = vperm.xlu0 %118, %v31
    %v120 = vpop.permute.xlu0 %119
    %123 = vset.pattern.permute.xlu0 0
    %124 = vperm.xlu0 %123, %v32
    %v125 = vpop.permute.xlu0 %124
    %128 = vset.pattern.permute.xlu0 0
    %129 = vperm.xlu0 %128, %v33
    %v130 = vpop.permute.xlu0 %129
    %133 = vset.pattern.permute.xlu0 0
    %134 = vperm.xlu0 %133, %v34
    %v135 = vpop.permute.xlu0 %134
    %138 = vset.pattern.permute.xlu0 0
    %139 = vperm.xlu0 %138, %v35
    %v140 = vpop.permute.xlu0 %139
    %143 = vset.pattern.permute.xlu0 0
    %144 = vperm.xlu0 %143, %v36
    %v145 = vpop.permute.xlu0 %144
    %148 = vset.pattern.permute.xlu0 0
    %149 = vperm.xlu0 %148, %v37
    %v150 = vpop.permute.xlu0 %149
    %153 = vset.pattern.permute.xlu0 0
    %154 = vperm.xlu0 %153, %v38
    %v155 = vpop.permute.xlu0 %154
    %158 = vset.pattern.permute.xlu0 0
    %159 = vperm.xlu0 %158, %v39
    %v160 = vpop.permute.xlu0 %159
    %163 = vset.pattern.permute.xlu0 0
    %164 = vperm.xlu0 %163, %v40
    %v165 = vpop.permute.xlu0 %164
    %168 = vset.pattern.permute.xlu0 0
    %169 = vperm.xlu0 %168, %v41
    %v170 = vpop.permute.xlu0 %169
    %173 = vset.pattern.permute.xlu0 0
    %174 = vperm.xlu0 %173, %v42
    %v175 = vpop.permute.xlu0 %174
    %178 = vset.pattern.permute.xlu0 0
    %179 = vperm.xlu0 %178, %v43
    %v180 = vpop.permute.xlu0 %179
    %183 = vset.pattern.permute.xlu0 0
    %184 = vperm.xlu0 %183, %v44
    %v185 = vpop.permute.xlu0 %184
    %188 = vset.pattern.permute.xlu0 0
    %189 = vperm.xlu0 %188, %v45
    %v190 = vpop.permute.xlu0 %189
    %193 = vset.pattern.permute.xlu0 0
    %194 = vperm.xlu0 %193, %v46
    %v195 = vpop.permute.xlu0 %194
    %198 = vset.pattern.permute.xlu0 0
    %199 = vperm.xlu0 %198, %v47
    %v200 = vpop.permute.xlu0 %199
    %203 = vset.pattern.permute.xlu0 0
    %204 = vperm.xlu0 %203, %v48
    %v205 = vpop.permute.xlu0 %204
    %208 = vset.pattern.permute.xlu0 0
    %209 = vperm.xlu0 %208, %v49
    %v210 = vpop.permute.xlu0 %209
    %v212 = vlaneseq
    %v213 = vshrl.u32 %v212, 7
    %v214 = vsub.s32 0, %v213
    %v215 = vrot.slane %v50, %v214
    %v216 = vlaneseq
    %v217 = vshrl.u32 %v216, 7
    %v218 = vsub.s32 0, %v217
    %v219 = vrot.slane %v51, %v218
    %v220 = vsub.f32 %v55, %v215
    %v221 = vsub.f32 %v60, %v215
    %v222 = vsub.f32 %v65, %v215
    %v223 = vsub.f32 %v70, %v215
    %v224 = vsub.f32 %v75, %v215
    %v225 = vsub.f32 %v80, %v215
    %v226 = vsub.f32 %v85, %v215
    %v227 = vsub.f32 %v90, %v215
    %v228 = vsub.f32 %v95, %v215
    %v229 = vsub.f32 %v100, %v215
    %v230 = vsub.f32 %v105, %v215
    %v231 = vsub.f32 %v110, %v215
    %v232 = vsub.f32 %v115, %v215
    %v233 = vsub.f32 %v120, %v215
    %v234 = vsub.f32 %v125, %v215
    %v235 = vsub.f32 %v130, %v215
    %v236 = vsub.f32 %v135, %v219
    %v237 = vsub.f32 %v140, %v219
    %v238 = vsub.f32 %v145, %v219
    %v239 = vsub.f32 %v150, %v219
    %v240 = vsub.f32 %v155, %v219
    %v241 = vsub.f32 %v160, %v219
    %v242 = vsub.f32 %v165, %v219
    %v243 = vsub.f32 %v170, %v219
    %v244 = vsub.f32 %v175, %v219
    %v245 = vsub.f32 %v180, %v219
    %v246 = vsub.f32 %v185, %v219
    %v247 = vsub.f32 %v190, %v219
    %v248 = vsub.f32 %v195, %v219
    %v249 = vsub.f32 %v200, %v219
    %v250 = vsub.f32 %v205, %v219
    %v251 = vsub.f32 %v210, %v219
    %v252 = vmul.f32 %v220, %v220
    %v253 = vmul.f32 %v221, %v221
    %v254 = vmul.f32 %v222, %v222
    %v255 = vmul.f32 %v223, %v223
    %v256 = vmul.f32 %v224, %v224
    %v257 = vmul.f32 %v225, %v225
    %v258 = vmul.f32 %v226, %v226
    %v259 = vmul.f32 %v227, %v227
    %v260 = vmul.f32 %v228, %v228
    %v261 = vmul.f32 %v229, %v229
    %v262 = vmul.f32 %v230, %v230
    %v263 = vmul.f32 %v231, %v231
    %v264 = vmul.f32 %v232, %v232
    %v265 = vmul.f32 %v233, %v233
    %v266 = vmul.f32 %v234, %v234
    %v267 = vmul.f32 %v235, %v235
    %v268 = vmul.f32 %v236, %v236
    %v269 = vmul.f32 %v237, %v237
    %v270 = vmul.f32 %v238, %v238
    %v271 = vmul.f32 %v239, %v239
    %v272 = vmul.f32 %v240, %v240
    %v273 = vmul.f32 %v241, %v241
    %v274 = vmul.f32 %v242, %v242
    %v275 = vmul.f32 %v243, %v243
    %v276 = vmul.f32 %v244, %v244
    %v277 = vmul.f32 %v245, %v245
    %v278 = vmul.f32 %v246, %v246
    %v279 = vmul.f32 %v247, %v247
    %v280 = vmul.f32 %v248, %v248
    %v281 = vmul.f32 %v249, %v249
    %v282 = vmul.f32 %v250, %v250
    %v283 = vmul.f32 %v251, %v251
    %284 = vset.pattern.permute.xlu0 1
    %285 = vperm.xlu0 %284, %v18
    %v286 = vpop.permute.xlu0 %285
    %288 = vset.pattern.permute.xlu0 1
    %289 = vperm.xlu0 %288, %v19
    %v290 = vpop.permute.xlu0 %289
    %292 = vset.pattern.permute.xlu0 1
    %293 = vperm.xlu0 %292, %v20
    %v294 = vpop.permute.xlu0 %293
    %296 = vset.pattern.permute.xlu0 1
    %297 = vperm.xlu0 %296, %v21
    %v298 = vpop.permute.xlu0 %297
    %300 = vset.pattern.permute.xlu0 1
    %301 = vperm.xlu0 %300, %v22
    %v302 = vpop.permute.xlu0 %301
    %304 = vset.pattern.permute.xlu0 1
    %305 = vperm.xlu0 %304, %v23
    %v306 = vpop.permute.xlu0 %305
    %308 = vset.pattern.permute.xlu0 1
    %309 = vperm.xlu0 %308, %v24
    %v310 = vpop.permute.xlu0 %309
    %312 = vset.pattern.permute.xlu0 1
    %313 = vperm.xlu0 %312, %v25
    %v314 = vpop.permute.xlu0 %313
    %316 = vset.pattern.permute.xlu0 1
    %317 = vperm.xlu0 %316, %v26
    %v318 = vpop.permute.xlu0 %317
    %320 = vset.pattern.permute.xlu0 1
    %321 = vperm.xlu0 %320, %v27
    %v322 = vpop.permute.xlu0 %321
    %324 = vset.pattern.permute.xlu0 1
    %325 = vperm.xlu0 %324, %v28
    %v326 = vpop.permute.xlu0 %325
    %328 = vset.pattern.permute.xlu0 1
    %329 = vperm.xlu0 %328, %v29
    %v330 = vpop.permute.xlu0 %329
    %332 = vset.pattern.permute.xlu0 1
    %333 = vperm.xlu0 %332, %v30
    %v334 = vpop.permute.xlu0 %333
    %336 = vset.pattern.permute.xlu0 1
    %337 = vperm.xlu0 %336, %v31
    %v338 = vpop.permute.xlu0 %337
    %340 = vset.pattern.permute.xlu0 1
    %341 = vperm.xlu0 %340, %v32
    %v342 = vpop.permute.xlu0 %341
    %344 = vset.pattern.permute.xlu0 1
    %345 = vperm.xlu0 %344, %v33
    %v346 = vpop.permute.xlu0 %345
    %348 = vset.pattern.permute.xlu0 1
    %349 = vperm.xlu0 %348, %v34
    %v350 = vpop.permute.xlu0 %349
    %352 = vset.pattern.permute.xlu0 1
    %353 = vperm.xlu0 %352, %v35
    %v354 = vpop.permute.xlu0 %353
    %356 = vset.pattern.permute.xlu0 1
    %357 = vperm.xlu0 %356, %v36
    %v358 = vpop.permute.xlu0 %357
    %360 = vset.pattern.permute.xlu0 1
    %361 = vperm.xlu0 %360, %v37
    %v362 = vpop.permute.xlu0 %361
    %364 = vset.pattern.permute.xlu0 1
    %365 = vperm.xlu0 %364, %v38
    %v366 = vpop.permute.xlu0 %365
    %368 = vset.pattern.permute.xlu0 1
    %369 = vperm.xlu0 %368, %v39
    %v370 = vpop.permute.xlu0 %369
    %372 = vset.pattern.permute.xlu0 1
    %373 = vperm.xlu0 %372, %v40
    %v374 = vpop.permute.xlu0 %373
    %376 = vset.pattern.permute.xlu0 1
    %377 = vperm.xlu0 %376, %v41
    %v378 = vpop.permute.xlu0 %377
    %380 = vset.pattern.permute.xlu0 1
    %381 = vperm.xlu0 %380, %v42
    %v382 = vpop.permute.xlu0 %381
    %384 = vset.pattern.permute.xlu0 1
    %385 = vperm.xlu0 %384, %v43
    %v386 = vpop.permute.xlu0 %385
    %388 = vset.pattern.permute.xlu0 1
    %389 = vperm.xlu0 %388, %v44
    %v390 = vpop.permute.xlu0 %389
    %392 = vset.pattern.permute.xlu0 1
    %393 = vperm.xlu0 %392, %v45
    %v394 = vpop.permute.xlu0 %393
    %396 = vset.pattern.permute.xlu0 1
    %397 = vperm.xlu0 %396, %v46
    %v398 = vpop.permute.xlu0 %397
    %400 = vset.pattern.permute.xlu0 1
    %401 = vperm.xlu0 %400, %v47
    %v402 = vpop.permute.xlu0 %401
    %404 = vset.pattern.permute.xlu0 1
    %405 = vperm.xlu0 %404, %v48
    %v406 = vpop.permute.xlu0 %405
    %408 = vset.pattern.permute.xlu0 1
    %409 = vperm.xlu0 %408, %v49
    %v410 = vpop.permute.xlu0 %409
    %v412 = vlaneseq
    %v413 = vshrl.u32 %v412, 7
    %v414 = vsub.s32 1, %v413
    %v415 = vrot.slane %v50, %v414
    %v416 = vlaneseq
    %v417 = vshrl.u32 %v416, 7
    %v418 = vsub.s32 1, %v417
    %v419 = vrot.slane %v51, %v418
    %v420 = vsub.f32 %v286, %v415
    %v421 = vsub.f32 %v290, %v415
    %v422 = vsub.f32 %v294, %v415
    %v423 = vsub.f32 %v298, %v415
    %v424 = vsub.f32 %v302, %v415
    %v425 = vsub.f32 %v306, %v415
    %v426 = vsub.f32 %v310, %v415
    %v427 = vsub.f32 %v314, %v415
    %v428 = vsub.f32 %v318, %v415
    %v429 = vsub.f32 %v322, %v415
    %v430 = vsub.f32 %v326, %v415
    %v431 = vsub.f32 %v330, %v415
    %v432 = vsub.f32 %v334, %v415
    %v433 = vsub.f32 %v338, %v415
    %v434 = vsub.f32 %v342, %v415
    %v435 = vsub.f32 %v346, %v415
    %v436 = vsub.f32 %v350, %v419
    %v437 = vsub.f32 %v354, %v419
    %v438 = vsub.f32 %v358, %v419
    %v439 = vsub.f32 %v362, %v419
    %v440 = vsub.f32 %v366, %v419
    %v441 = vsub.f32 %v370, %v419
    %v442 = vsub.f32 %v374, %v419
    %v443 = vsub.f32 %v378, %v419
    %v444 = vsub.f32 %v382, %v419
    %v445 = vsub.f32 %v386, %v419
    %v446 = vsub.f32 %v390, %v419
    %v447 = vsub.f32 %v394, %v419
    %v448 = vsub.f32 %v398, %v419
    %v449 = vsub.f32 %v402, %v419
    %v450 = vsub.f32 %v406, %v419
    %v451 = vsub.f32 %v410, %v419
    %v452 = vmul.f32 %v420, %v420
    %v453 = vmul.f32 %v421, %v421
    %v454 = vmul.f32 %v422, %v422
    %v455 = vmul.f32 %v423, %v423
    %v456 = vmul.f32 %v424, %v424
    %v457 = vmul.f32 %v425, %v425
    %v458 = vmul.f32 %v426, %v426
    %v459 = vmul.f32 %v427, %v427
    %v460 = vmul.f32 %v428, %v428
    %v461 = vmul.f32 %v429, %v429
    %v462 = vmul.f32 %v430, %v430
    %v463 = vmul.f32 %v431, %v431
    %v464 = vmul.f32 %v432, %v432
    %v465 = vmul.f32 %v433, %v433
    %v466 = vmul.f32 %v434, %v434
    %v467 = vmul.f32 %v435, %v435
    %v468 = vmul.f32 %v436, %v436
    %v469 = vmul.f32 %v437, %v437
    %v470 = vmul.f32 %v438, %v438
    %v471 = vmul.f32 %v439, %v439
    %v472 = vmul.f32 %v440, %v440
    %v473 = vmul.f32 %v441, %v441
    %v474 = vmul.f32 %v442, %v442
    %v475 = vmul.f32 %v443, %v443
    %v476 = vmul.f32 %v444, %v444
    %v477 = vmul.f32 %v445, %v445
    %v478 = vmul.f32 %v446, %v446
    %v479 = vmul.f32 %v447, %v447
    %v480 = vmul.f32 %v448, %v448
    %v481 = vmul.f32 %v449, %v449
    %v482 = vmul.f32 %v450, %v450
    %v483 = vmul.f32 %v451, %v451
    %v484 = vadd.f32 %v252, %v452
    %v485 = vadd.f32 %v253, %v453
    %v486 = vadd.f32 %v254, %v454
    %v487 = vadd.f32 %v255, %v455
    %v488 = vadd.f32 %v256, %v456
    %v489 = vadd.f32 %v257, %v457
    %v490 = vadd.f32 %v258, %v458
    %v491 = vadd.f32 %v259, %v459
    %v492 = vadd.f32 %v260, %v460
    %v493 = vadd.f32 %v261, %v461
    %v494 = vadd.f32 %v262, %v462
    %v495 = vadd.f32 %v263, %v463
    %v496 = vadd.f32 %v264, %v464
    %v497 = vadd.f32 %v265, %v465
    %v498 = vadd.f32 %v266, %v466
    %v499 = vadd.f32 %v267, %v467
    %v500 = vadd.f32 %v268, %v468
    %v501 = vadd.f32 %v269, %v469
    %v502 = vadd.f32 %v270, %v470
    %v503 = vadd.f32 %v271, %v471
    %v504 = vadd.f32 %v272, %v472
    %v505 = vadd.f32 %v273, %v473
    %v506 = vadd.f32 %v274, %v474
    %v507 = vadd.f32 %v275, %v475
    %v508 = vadd.f32 %v276, %v476
    %v509 = vadd.f32 %v277, %v477
    %v510 = vadd.f32 %v278, %v478
    %v511 = vadd.f32 %v279, %v479
    %v512 = vadd.f32 %v280, %v480
    %v513 = vadd.f32 %v281, %v481
    %v514 = vadd.f32 %v282, %v482
    %v515 = vadd.f32 %v283, %v483
    %516 = vset.pattern.permute.xlu0 2
    %517 = vperm.xlu0 %516, %v18
    %v518 = vpop.permute.xlu0 %517
    %520 = vset.pattern.permute.xlu0 2
    %521 = vperm.xlu0 %520, %v19
    %v522 = vpop.permute.xlu0 %521
    %524 = vset.pattern.permute.xlu0 2
    %525 = vperm.xlu0 %524, %v20
    %v526 = vpop.permute.xlu0 %525
    %528 = vset.pattern.permute.xlu0 2
    %529 = vperm.xlu0 %528, %v21
    %v530 = vpop.permute.xlu0 %529
    %532 = vset.pattern.permute.xlu0 2
    %533 = vperm.xlu0 %532, %v22
    %v534 = vpop.permute.xlu0 %533
    %536 = vset.pattern.permute.xlu0 2
    %537 = vperm.xlu0 %536, %v23
    %v538 = vpop.permute.xlu0 %537
    %540 = vset.pattern.permute.xlu0 2
    %541 = vperm.xlu0 %540, %v24
    %v542 = vpop.permute.xlu0 %541
    %544 = vset.pattern.permute.xlu0 2
    %545 = vperm.xlu0 %544, %v25
    %v546 = vpop.permute.xlu0 %545
    %548 = vset.pattern.permute.xlu0 2
    %549 = vperm.xlu0 %548, %v26
    %v550 = vpop.permute.xlu0 %549
    %552 = vset.pattern.permute.xlu0 2
    %553 = vperm.xlu0 %552, %v27
    %v554 = vpop.permute.xlu0 %553
    %556 = vset.pattern.permute.xlu0 2
    %557 = vperm.xlu0 %556, %v28
    %v558 = vpop.permute.xlu0 %557
    %560 = vset.pattern.permute.xlu0 2
    %561 = vperm.xlu0 %560, %v29
    %v562 = vpop.permute.xlu0 %561
    %564 = vset.pattern.permute.xlu0 2
    %565 = vperm.xlu0 %564, %v30
    %v566 = vpop.permute.xlu0 %565
    %568 = vset.pattern.permute.xlu0 2
    %569 = vperm.xlu0 %568, %v31
    %v570 = vpop.permute.xlu0 %569
    %572 = vset.pattern.permute.xlu0 2
    %573 = vperm.xlu0 %572, %v32
    %v574 = vpop.permute.xlu0 %573
    %576 = vset.pattern.permute.xlu0 2
    %577 = vperm.xlu0 %576, %v33
    %v578 = vpop.permute.xlu0 %577
    %580 = vset.pattern.permute.xlu0 2
    %581 = vperm.xlu0 %580, %v34
    %v582 = vpop.permute.xlu0 %581
    %584 = vset.pattern.permute.xlu0 2
    %585 = vperm.xlu0 %584, %v35
    %v586 = vpop.permute.xlu0 %585
    %588 = vset.pattern.permute.xlu0 2
    %589 = vperm.xlu0 %588, %v36
    %v590 = vpop.permute.xlu0 %589
    %592 = vset.pattern.permute.xlu0 2
    %593 = vperm.xlu0 %592, %v37
    %v594 = vpop.permute.xlu0 %593
    %596 = vset.pattern.permute.xlu0 2
    %597 = vperm.xlu0 %596, %v38
    %v598 = vpop.permute.xlu0 %597
    %600 = vset.pattern.permute.xlu0 2
    %601 = vperm.xlu0 %600, %v39
    %v602 = vpop.permute.xlu0 %601
    %604 = vset.pattern.permute.xlu0 2
    %605 = vperm.xlu0 %604, %v40
    %v606 = vpop.permute.xlu0 %605
    %608 = vset.pattern.permute.xlu0 2
    %609 = vperm.xlu0 %608, %v41
    %v610 = vpop.permute.xlu0 %609
    %612 = vset.pattern.permute.xlu0 2
    %613 = vperm.xlu0 %612, %v42
    %v614 = vpop.permute.xlu0 %613
    %616 = vset.pattern.permute.xlu0 2
    %617 = vperm.xlu0 %616, %v43
    %v618 = vpop.permute.xlu0 %617
    %620 = vset.pattern.permute.xlu0 2
    %621 = vperm.xlu0 %620, %v44
    %v622 = vpop.permute.xlu0 %621
    %624 = vset.pattern.permute.xlu0 2
    %625 = vperm.xlu0 %624, %v45
    %v626 = vpop.permute.xlu0 %625
    %628 = vset.pattern.permute.xlu0 2
    %629 = vperm.xlu0 %628, %v46
    %v630 = vpop.permute.xlu0 %629
    %632 = vset.pattern.permute.xlu0 2
    %633 = vperm.xlu0 %632, %v47
    %v634 = vpop.permute.xlu0 %633
    %636 = vset.pattern.permute.xlu0 2
    %637 = vperm.xlu0 %636, %v48
    %v638 = vpop.permute.xlu0 %637
    %640 = vset.pattern.permute.xlu0 2
    %641 = vperm.xlu0 %640, %v49
    %v642 = vpop.permute.xlu0 %641
    %v644 = vlaneseq
    %v645 = vshrl.u32 %v644, 7
    %v646 = vsub.s32 2, %v645
    %v647 = vrot.slane %v50, %v646
    %v648 = vlaneseq
    %v649 = vshrl.u32 %v648, 7
    %v650 = vsub.s32 2, %v649
    %v651 = vrot.slane %v51, %v650
    %v652 = vsub.f32 %v518, %v647
    %v653 = vsub.f32 %v522, %v647
    %v654 = vsub.f32 %v526, %v647
    %v655 = vsub.f32 %v530, %v647
    %v656 = vsub.f32 %v534, %v647
    %v657 = vsub.f32 %v538, %v647
    %v658 = vsub.f32 %v542, %v647
    %v659 = vsub.f32 %v546, %v647
    %v660 = vsub.f32 %v550, %v647
    %v661 = vsub.f32 %v554, %v647
    %v662 = vsub.f32 %v558, %v647
    %v663 = vsub.f32 %v562, %v647
    %v664 = vsub.f32 %v566, %v647
    %v665 = vsub.f32 %v570, %v647
    %v666 = vsub.f32 %v574, %v647
    %v667 = vsub.f32 %v578, %v647
    %v668 = vsub.f32 %v582, %v651
    %v669 = vsub.f32 %v586, %v651
    %v670 = vsub.f32 %v590, %v651
    %v671 = vsub.f32 %v594, %v651
    %v672 = vsub.f32 %v598, %v651
    %v673 = vsub.f32 %v602, %v651
    %v674 = vsub.f32 %v606, %v651
    %v675 = vsub.f32 %v610, %v651
    %v676 = vsub.f32 %v614, %v651
    %v677 = vsub.f32 %v618, %v651
    %v678 = vsub.f32 %v622, %v651
    %v679 = vsub.f32 %v626, %v651
    %v680 = vsub.f32 %v630, %v651
    %v681 = vsub.f32 %v634, %v651
    %v682 = vsub.f32 %v638, %v651
    %v683 = vsub.f32 %v642, %v651
    %v684 = vmul.f32 %v652, %v652
    %v685 = vmul.f32 %v653, %v653
    %v686 = vmul.f32 %v654, %v654
    %v687 = vmul.f32 %v655, %v655
    %v688 = vmul.f32 %v656, %v656
    %v689 = vmul.f32 %v657, %v657
    %v690 = vmul.f32 %v658, %v658
    %v691 = vmul.f32 %v659, %v659
    %v692 = vmul.f32 %v660, %v660
    %v693 = vmul.f32 %v661, %v661
    %v694 = vmul.f32 %v662, %v662
    %v695 = vmul.f32 %v663, %v663
    %v696 = vmul.f32 %v664, %v664
    %v697 = vmul.f32 %v665, %v665
    %v698 = vmul.f32 %v666, %v666
    %v699 = vmul.f32 %v667, %v667
    %v700 = vmul.f32 %v668, %v668
    %v701 = vmul.f32 %v669, %v669
    %v702 = vmul.f32 %v670, %v670
    %v703 = vmul.f32 %v671, %v671
    %v704 = vmul.f32 %v672, %v672
    %v705 = vmul.f32 %v673, %v673
    %v706 = vmul.f32 %v674, %v674
    %v707 = vmul.f32 %v675, %v675
    %v708 = vmul.f32 %v676, %v676
    %v709 = vmul.f32 %v677, %v677
    %v710 = vmul.f32 %v678, %v678
    %v711 = vmul.f32 %v679, %v679
    %v712 = vmul.f32 %v680, %v680
    %v713 = vmul.f32 %v681, %v681
    %v714 = vmul.f32 %v682, %v682
    %v715 = vmul.f32 %v683, %v683
    %v716 = vadd.f32 %v484, %v684
    %v717 = vadd.f32 %v485, %v685
    %v718 = vadd.f32 %v486, %v686
    %v719 = vadd.f32 %v487, %v687
    %v720 = vadd.f32 %v488, %v688
    %v721 = vadd.f32 %v489, %v689
    %v722 = vadd.f32 %v490, %v690
    %v723 = vadd.f32 %v491, %v691
    %v724 = vadd.f32 %v492, %v692
    %v725 = vadd.f32 %v493, %v693
    %v726 = vadd.f32 %v494, %v694
    %v727 = vadd.f32 %v495, %v695
    %v728 = vadd.f32 %v496, %v696
    %v729 = vadd.f32 %v497, %v697
    %v730 = vadd.f32 %v498, %v698
    %v731 = vadd.f32 %v499, %v699
    %v732 = vadd.f32 %v500, %v700
    %v733 = vadd.f32 %v501, %v701
    %v734 = vadd.f32 %v502, %v702
    %v735 = vadd.f32 %v503, %v703
    %v736 = vadd.f32 %v504, %v704
    %v737 = vadd.f32 %v505, %v705
    %v738 = vadd.f32 %v506, %v706
    %v739 = vadd.f32 %v507, %v707
    %v740 = vadd.f32 %v508, %v708
    %v741 = vadd.f32 %v509, %v709
    %v742 = vadd.f32 %v510, %v710
    %v743 = vadd.f32 %v511, %v711
    %v744 = vadd.f32 %v512, %v712
    %v745 = vadd.f32 %v513, %v713
    %v746 = vadd.f32 %v514, %v714
    %v747 = vadd.f32 %v515, %v715
    %vm748 = vcmp.le.f32.partialorder %v716, 1.21
    %vm749 = vcmp.le.f32.partialorder %v717, 1.21
    %vm750 = vcmp.le.f32.partialorder %v718, 1.21
    %vm751 = vcmp.le.f32.partialorder %v719, 1.21
    %vm752 = vcmp.le.f32.partialorder %v720, 1.21
    %vm753 = vcmp.le.f32.partialorder %v721, 1.21
    %vm754 = vcmp.le.f32.partialorder %v722, 1.21
    %vm755 = vcmp.le.f32.partialorder %v723, 1.21
    %vm756 = vcmp.le.f32.partialorder %v724, 1.21
    %vm757 = vcmp.le.f32.partialorder %v725, 1.21
    %vm758 = vcmp.le.f32.partialorder %v726, 1.21
    %vm759 = vcmp.le.f32.partialorder %v727, 1.21
    %vm760 = vcmp.le.f32.partialorder %v728, 1.21
    %vm761 = vcmp.le.f32.partialorder %v729, 1.21
    %vm762 = vcmp.le.f32.partialorder %v730, 1.21
    %vm763 = vcmp.le.f32.partialorder %v731, 1.21
    %vm764 = vcmp.le.f32.partialorder %v732, 1.21
    %vm765 = vcmp.le.f32.partialorder %v733, 1.21
    %vm766 = vcmp.le.f32.partialorder %v734, 1.21
    %vm767 = vcmp.le.f32.partialorder %v735, 1.21
    %vm768 = vcmp.le.f32.partialorder %v736, 1.21
    %vm769 = vcmp.le.f32.partialorder %v737, 1.21
    %vm770 = vcmp.le.f32.partialorder %v738, 1.21
    %vm771 = vcmp.le.f32.partialorder %v739, 1.21
    %vm772 = vcmp.le.f32.partialorder %v740, 1.21
    %vm773 = vcmp.le.f32.partialorder %v741, 1.21
    %vm774 = vcmp.le.f32.partialorder %v742, 1.21
    %vm775 = vcmp.le.f32.partialorder %v743, 1.21
    %vm776 = vcmp.le.f32.partialorder %v744, 1.21
    %vm777 = vcmp.le.f32.partialorder %v745, 1.21
    %vm778 = vcmp.le.f32.partialorder %v746, 1.21
    %vm779 = vcmp.le.f32.partialorder %v747, 1.21
    %v780 = vsel %vm748, 1, 0
    %v781 = vsel %vm749, 1, 0
    %v782 = vsel %vm750, 1, 0
    %v783 = vsel %vm751, 1, 0
    %v784 = vsel %vm752, 1, 0
    %v785 = vsel %vm753, 1, 0
    %v786 = vsel %vm754, 1, 0
    %v787 = vsel %vm755, 1, 0
    %v788 = vsel %vm756, 1, 0
    %v789 = vsel %vm757, 1, 0
    %v790 = vsel %vm758, 1, 0
    %v791 = vsel %vm759, 1, 0
    %v792 = vsel %vm760, 1, 0
    %v793 = vsel %vm761, 1, 0
    %v794 = vsel %vm762, 1, 0
    %v795 = vsel %vm763, 1, 0
    %v796 = vsel %vm764, 1, 0
    %v797 = vsel %vm765, 1, 0
    %v798 = vsel %vm766, 1, 0
    %v799 = vsel %vm767, 1, 0
    %v800 = vsel %vm768, 1, 0
    %v801 = vsel %vm769, 1, 0
    %v802 = vsel %vm770, 1, 0
    %v803 = vsel %vm771, 1, 0
    %v804 = vsel %vm772, 1, 0
    %v805 = vsel %vm773, 1, 0
    %v806 = vsel %vm774, 1, 0
    %v807 = vsel %vm775, 1, 0
    %v808 = vsel %vm776, 1, 0
    %v809 = vsel %vm777, 1, 0
    %v810 = vsel %vm778, 1, 0
    %v811 = vsel %vm779, 1, 0
    %v812 = vcvt.s32.f32 %v780
    %v813 = vcvt.s32.f32 %v781
    %v814 = vcvt.s32.f32 %v782
    %v815 = vcvt.s32.f32 %v783
    %v816 = vcvt.s32.f32 %v784
    %v817 = vcvt.s32.f32 %v785
    %v818 = vcvt.s32.f32 %v786
    %v819 = vcvt.s32.f32 %v787
    %v820 = vcvt.s32.f32 %v788
    %v821 = vcvt.s32.f32 %v789
    %v822 = vcvt.s32.f32 %v790
    %v823 = vcvt.s32.f32 %v791
    %v824 = vcvt.s32.f32 %v792
    %v825 = vcvt.s32.f32 %v793
    %v826 = vcvt.s32.f32 %v794
    %v827 = vcvt.s32.f32 %v795
    %v828 = vcvt.s32.f32 %v796
    %v829 = vcvt.s32.f32 %v797
    %v830 = vcvt.s32.f32 %v798
    %v831 = vcvt.s32.f32 %v799
    %v832 = vcvt.s32.f32 %v800
    %v833 = vcvt.s32.f32 %v801
    %v834 = vcvt.s32.f32 %v802
    %v835 = vcvt.s32.f32 %v803
    %v836 = vcvt.s32.f32 %v804
    %v837 = vcvt.s32.f32 %v805
    %v838 = vcvt.s32.f32 %v806
    %v839 = vcvt.s32.f32 %v807
    %v840 = vcvt.s32.f32 %v808
    %v841 = vcvt.s32.f32 %v809
    %v842 = vcvt.s32.f32 %v810
    %v843 = vcvt.s32.f32 %v811
    %v844 = vld [vmem:[#allocation2] sm:$0x1]
    %v845 = vld [vmem:[#allocation2 + $0x1] sm:$0x1]
    %v846 = vadd.f32 %v812, %v813
    %v847 = vadd.f32 %v846, %v814
    %v848 = vadd.f32 %v847, %v815
    %v849 = vadd.f32 %v848, %v816
    %v850 = vadd.f32 %v849, %v817
    %v851 = vadd.f32 %v850, %v818
    %v852 = vadd.f32 %v851, %v819
    %v853 = vadd.f32 %v852, %v820
    %v854 = vadd.f32 %v853, %v821
    %v855 = vadd.f32 %v854, %v822
    %v856 = vadd.f32 %v855, %v823
    %v857 = vadd.f32 %v856, %v824
    %v858 = vadd.f32 %v857, %v825
    %v859 = vadd.f32 %v858, %v826
    %v860 = vadd.f32 %v859, %v827
    %v861 = vrot.slane %v860, 4
    %v862 = vadd.f32 %v860, %v861
    %v863 = vrot.slane %v862, 2
    %v864 = vadd.f32 %v862, %v863
    %v865 = vrot.slane %v864, 1
    %v866 = vadd.f32 %v864, %v865
    %v867 = vadd.f32 %v828, %v829
    %v868 = vadd.f32 %v867, %v830
    %v869 = vadd.f32 %v868, %v831
    %v870 = vadd.f32 %v869, %v832
    %v871 = vadd.f32 %v870, %v833
    %v872 = vadd.f32 %v871, %v834
    %v873 = vadd.f32 %v872, %v835
    %v874 = vadd.f32 %v873, %v836
    %v875 = vadd.f32 %v874, %v837
    %v876 = vadd.f32 %v875, %v838
    %v877 = vadd.f32 %v876, %v839
    %v878 = vadd.f32 %v877, %v840
    %v879 = vadd.f32 %v878, %v841
    %v880 = vadd.f32 %v879, %v842
    %v881 = vadd.f32 %v880, %v843
    %v882 = vrot.slane %v881, 4
    %v883 = vadd.f32 %v881, %v882
    %v884 = vrot.slane %v883, 2
    %v885 = vadd.f32 %v883, %v884
    %v886 = vrot.slane %v885, 1
    %v887 = vadd.f32 %v885, %v886
    %v888 = vadd.f32 %v844, %v866
    %v889 = vadd.f32 %v845, %v887
    %890 = vst [vmem:[#allocation2] sm:$0x1] %v888
    %891 = vst [vmem:[#allocation2 + $0x1] sm:$0x1] %v889
    // Predicated region
    $region14: #{ror_keep_mask.1} parent=1 // pred_check
      %p892 = pneg %p12
    $region15: #{ror_keep_mask.1} parent=1 // pred_check_branch
      %894 = sbr.rel (%p892) target = $region17
    $region16: #{ror_keep_mask.1} parent=1 // pred_region
      %v895 = vld [vmem:[#allocation2] sm:$0x1]
      %v896 = vld [vmem:[#allocation2 + $0x1] sm:$0x1]
      %vm897 = vcmp.ge.f32.partialorder %v895, 2.0
      %vm898 = vcmp.ge.f32.partialorder %v896, 2.0
      %v899 = vsel %vm897, 1, 0
      %v900 = vsel %vm898, 1, 0
      %901 = vst [vmem:[#allocation3] sm:$0x1] %v899
      %902 = vst [vmem:[#allocation3 + $0x1] sm:$0x1] %v900
    $region17: #{ror_keep_mask.1} parent=1 // pred_fallthru
      _
    // Predicated region
    $region18: #{ror_keep_mask.1} parent=1 // pred_check
      _
    $region19: #{ror_keep_mask.1} parent=1 // pred_check_branch
      %904 = sbr.rel (0) target = $region21
    $region20: #{ror_keep_mask.1} parent=1 // pred_region
      %s906 = ssub.s32 32, 32
      %907 = vsyncadd [#allocation4], %s906
      %s908 = sshll.u32 [#allocation3], 4
      %s909 = int_to_ptr.vmem [resolvable:$true] %s908
      %914 = dma.vmem_to_hbm [thread:$0]  %s909, 32, %s2, [#allocation4], 16, 16, 1
    $region21: #{ror_keep_mask.1} parent=1 // pred_fallthru
      _
    // Predicated region
    $region22: #{ror_keep_mask.1} parent=1 // pred_check
      _
    $region23: #{ror_keep_mask.1} parent=1 // pred_check_branch
      %916 = sbr.rel (0) target = $region25
    $region24: #{ror_keep_mask.1} parent=1 // pred_region
      %917 = dma.done [#allocation4], 32
    $region25: #{ror_keep_mask.1} parent=1 // pred_fallthru
      _
    %918 = vsyncpa [#allocation4], 1

</llo_original>
